<compile_context>
chip_gen: v7x
topology: tpu7x:2x2x1
jax: 0.10.0
libtpu: 0.0.40
codegen_flags: <defaults>
</compile_context>

<pallas_src>
import jax
import jax.numpy as jnp
from jax.experimental import pallas as pl
from jax.experimental.pallas import tpu as pltpu


def _round_up(n: int, m: int) -> int:
    return ((n + m - 1) // m) * m


def mlp_classifier_kernel(x_ref, w1_ref, b1_ref, w2_ref, b2_ref, o_ref):
    # x:  [TB, H]  bf16     w1: [H, H]    bf16     b1: [1, H]    f32
    # w2: [H, Cp]  bf16     b2: [1, Cp]   f32 (padded lanes hold -1e30)
    # o:  [TB, Cp] bf16 log-probs (padded lanes ~ -1e30, sliced off by consumer)

    # lin1 + bias + relu: bf16 MXU matmul, f32 accumulation, f32 epilogue.
    h = jnp.dot(x_ref[...], w1_ref[...],
                preferred_element_type=jnp.float32) + b1_ref[...]
    h = jnp.maximum(h, 0.0)

    # dropout(p=0.5) is identity in eval mode.

    # lin2 + bias. Padded class columns get logit ~ -1e30 from the padded f32
    # bias, so they never win the max and contribute exactly 0 to the sum.
    logits = jnp.dot(h.astype(jnp.bfloat16), w2_ref[...],
                     preferred_element_type=jnp.float32) + b2_ref[...]

    # Numerically stable log_softmax over the lane-dense (128-wide) class dim.
    # All math in f32 on the VPU/EUP; only the final store narrows to bf16.
    m = jnp.max(logits, axis=-1, keepdims=True)
    shifted = logits - m
    lse = jnp.log(jnp.sum(jnp.exp(shifted), axis=-1, keepdims=True))
    o_ref[...] = (shifted - lse).astype(o_ref.dtype)


def _choose_block_b(B: int, block_b: int) -> int:
    """Rows per grid step: multiple of 8 sublanes, <= block_b, >= 2 grid steps
    when possible (v7x shards the 'parallel' axis over its 2 TensorCores), and
    batch-padding waste bounded to ~12.5%."""
    upper = min(block_b, max(8, _round_up(pl.cdiv(B, 2), 8)))
    for tb in (512, 256, 128, 64, 32, 16, 8):
        if tb > upper:
            continue
        if _round_up(B, tb) - B <= max(B // 8, 7):
            return tb
    return 8


def mlp_classifier(x, w1, b1, w2, b2, *, block_b=256, unpad=True):
    """x: [B, H]; w1: [H, H]; b1: [H]; w2: [H, C]; b2: [C] (weights in->out).

    Returns bf16 log-probs: [B, C] if unpad=True (drop-in module shape, costs
    one extra slice op), otherwise the padded [B_pad, 128] tile straight from
    the kernel with no extra HBM round trip (slice lazily in the consumer)."""
    B, H = x.shape
    C = w2.shape[1]

    # ---- wrapper-side layout prep (cheap XLA ops) --------------------------
    # Lane-dense output: pad the class dim up to a multiple of 128 lanes so
    # the output stores are full (unmasked) `vst`s.
    C_pad = _round_up(max(C, 128), 128)

    # bf16 MXU inputs, f32 accumulation/epilogue in the kernel.  Pre-casting x
    # here halves its DMA bytes (it is the only streamed input).
    x_b = x.astype(jnp.bfloat16)
    w1_b = w1.astype(jnp.bfloat16)
    w2_b = jnp.zeros((H, C_pad), jnp.bfloat16).at[:, :C].set(
        w2.astype(jnp.bfloat16))
    b1_2d = b1.reshape(1, H).astype(jnp.float32)
    b2_2d = jnp.full((1, C_pad), -1e30, jnp.float32).at[0, :C].set(
        b2.astype(jnp.float32))

    # Batch tiling.
    TB = _choose_block_b(B, block_b)
    B_pad = _round_up(B, TB)
    x_p = x_b if B_pad == B else jnp.pad(x_b, ((0, B_pad - B), (0, 0)))
    nb = B_pad // TB

    cost = pl.CostEstimate(
        flops=2 * B_pad * H * H + 2 * B_pad * H * C,   # true C for lin2
        transcendentals=B_pad * C_pad,                  # exp in log_softmax
        bytes_accessed=(x_p.size * 2 + w1_b.size * 2 + w2_b.size * 2
                        + b1_2d.size * 4 + b2_2d.size * 4
                        + B_pad * C_pad * 2),
    )

    # Resident weight/bias blocks have a constant (0, 0) block index, so
    # double-buffering them only doubles their VMEM footprint.  Single-buffer
    # them once they are big enough to matter for v7x's 64 MiB physical VMEM;
    # at small H we never pass the kwarg at all.
    w_bytes = (w1_b.size + w2_b.size) * 2 + (b1_2d.size + b2_2d.size) * 4
    res_kw = {"pipeline_mode": pl.Buffered(1)} if w_bytes >= (8 << 20) else {}

    cp_kwargs = dict(dimension_semantics=("parallel",))
    vmem_est = (w_bytes * (1 if res_kw else 2)
                + 2 * TB * H * 2            # x block, double-buffered, bf16
                + 2 * TB * C_pad * 2        # out block, double-buffered, bf16
                + 4 * TB * C_pad * 4)       # f32 epilogue temporaries headroom
    if vmem_est > (24 << 20):
        cp_kwargs["vmem_limit_bytes"] = min(int(vmem_est * 2), 100 << 20)

    vmem = pltpu.MemorySpace.VMEM
    out = pl.pallas_call(
        mlp_classifier_kernel,
        out_shape=jax.ShapeDtypeStruct((B_pad, C_pad), jnp.bfloat16),
        grid=(nb,),
        in_specs=[
            pl.BlockSpec((TB, H), lambda i: (i, 0), memory_space=vmem),
            pl.BlockSpec((H, H), lambda i: (0, 0), memory_space=vmem, **res_kw),
            pl.BlockSpec((1, H), lambda i: (0, 0), memory_space=vmem, **res_kw),
            pl.BlockSpec((H, C_pad), lambda i: (0, 0), memory_space=vmem,
                         **res_kw),
            pl.BlockSpec((1, C_pad), lambda i: (0, 0), memory_space=vmem,
                         **res_kw),
        ],
        out_specs=pl.BlockSpec((TB, C_pad), lambda i: (i, 0),
                               memory_space=vmem),
        compiler_params=pltpu.CompilerParams(**cp_kwargs),
        cost_estimate=cost,
    )(x_p, w1_b, b1_2d, w2_b, b2_2d)

    return out[:B, :C] if unpad else out


def reference(x, w1, b1, w2, b2):
    """Eval-mode forward mirroring the kernel's precision policy
    (bf16 matmul inputs, f32 accumulation and epilogue)."""
    h = jnp.dot(x.astype(jnp.bfloat16), w1.astype(jnp.bfloat16),
                preferred_element_type=jnp.float32) + b1
    h = jnp.maximum(h, 0.0)
    logits = jnp.dot(h.astype(jnp.bfloat16), w2.astype(jnp.bfloat16),
                     preferred_element_type=jnp.float32) + b2
    return jax.nn.log_softmax(logits, axis=1)


if __name__ == "__main__":
    # Small shapes consistent with the module: args.n_hidden=32, args.n_class=8.
    B, H, C = 8, 32, 8

    key = jax.random.PRNGKey(0)
    kx, kw1, kb1, kw2, kb2 = jax.random.split(key, 5)

    x = jax.random.normal(kx, (B, H), dtype=jnp.float32)
    # PyTorch Linear stores weight as [out, in]; we keep the transposed
    # [in, out] layout so the kernel multiplies without a transpose.
    w1 = jax.random.normal(kw1, (H, H), dtype=jnp.float32) * 0.1
    b1 = jax.random.normal(kb1, (H,), dtype=jnp.float32) * 0.1
    w2 = jax.random.normal(kw2, (H, C), dtype=jnp.float32) * 0.1
    b2 = jax.random.normal(kb2, (C,), dtype=jnp.float32) * 0.1

    # unpad=False: take the padded bf16 tile straight from the kernel (no extra
    # HBM round trip in the wrapper); slice lazily here, on the consumer side.
    out_pad = mlp_classifier(x, w1, b1, w2, b2, unpad=False)
    out_pad = jax.block_until_ready(out_pad)
    out = out_pad[:B, :C].astype(jnp.float32)

    ref = reference(x, w1, b1, w2, b2)
    assert out.shape == (B, C)
    assert jnp.allclose(out, ref, atol=3e-2, rtol=3e-2), "mismatch vs reference"

    print("KERNEL_OK")
</pallas_src>

<mosaic_0001>
module attributes {stable_mosaic.version = 11 : i64} {
  func.func @mlp_classifier_kernel(%arg0: i32, %arg1: memref<8x32xbf16, #tpu.memory_space<vmem>>, %arg2: memref<32x32xbf16, #tpu.memory_space<vmem>>, %arg3: memref<1x32xf32, #tpu.memory_space<vmem>>, %arg4: memref<32x128xbf16, #tpu.memory_space<vmem>>, %arg5: memref<1x128xf32, #tpu.memory_space<vmem>>, %arg6: memref<8x128xbf16, #tpu.memory_space<vmem>>) attributes {dimension_semantics = [#tpu.dimension_semantics<parallel>], iteration_bounds = array<i64: 1>, scalar_prefetch = 0 : i64, scratch_operands = 0 : i64, tpu.core_type = #tpu.core_type<tc>, window_params = [{transform_indices = @transform_0, window_bounds = array<i64: 8, 32>}, {pipeline_mode = #tpu.pipeline_mode<synchronous>, transform_indices = @transform_1, window_bounds = array<i64: 32, 32>}, {pipeline_mode = #tpu.pipeline_mode<synchronous>, transform_indices = @transform_2, window_bounds = array<i64: 1, 32>}, {pipeline_mode = #tpu.pipeline_mode<synchronous>, transform_indices = @transform_3, window_bounds = array<i64: 32, 128>}, {pipeline_mode = #tpu.pipeline_mode<synchronous>, transform_indices = @transform_4, window_bounds = array<i64: 1, 128>}, {transform_indices = @transform_5, window_bounds = array<i64: 8, 128>}]} {
    %c0 = arith.constant 0 : index
    %c0_0 = arith.constant 0 : index
    %0 = vector.load %arg1[%c0, %c0_0] : memref<8x32xbf16, #tpu.memory_space<vmem>>, vector<8x32xbf16>
    %c0_1 = arith.constant 0 : index
    %c0_2 = arith.constant 0 : index
    %1 = vector.load %arg2[%c0_1, %c0_2] : memref<32x32xbf16, #tpu.memory_space<vmem>>, vector<32x32xbf16>
    %cst = arith.constant dense<0.000000e+00> : vector<8x32xf32>
    %2 = tpu.matmul %0, %1, %cst {dimension_numbers = #tpu.dot_dimension_numbers<[1], [0], [0], [1], [0, 0, 1, 1], [], []>} : vector<8x32xbf16>, vector<32x32xbf16>, vector<8x32xf32> -> vector<8x32xf32>
    %c0_3 = arith.constant 0 : index
    %c0_4 = arith.constant 0 : index
    %3 = vector.load %arg3[%c0_3, %c0_4] : memref<1x32xf32, #tpu.memory_space<vmem>>, vector<1x32xf32>
    %4 = vector.broadcast %3 : vector<1x32xf32> to vector<8x32xf32>
    %5 = arith.addf %2, %4 : vector<8x32xf32>
    %cst_5 = arith.constant 0.000000e+00 : f32
    %6 = vector.broadcast %cst_5 : f32 to vector<8x32xf32>
    %7 = arith.maximumf %5, %6 : vector<8x32xf32>
    %8 = arith.truncf %7 : vector<8x32xf32> to vector<8x32xbf16>
    %c0_6 = arith.constant 0 : index
    %c0_7 = arith.constant 0 : index
    %9 = vector.load %arg4[%c0_6, %c0_7] : memref<32x128xbf16, #tpu.memory_space<vmem>>, vector<32x128xbf16>
    %cst_8 = arith.constant dense<0.000000e+00> : vector<8x128xf32>
    %10 = tpu.matmul %8, %9, %cst_8 {dimension_numbers = #tpu.dot_dimension_numbers<[1], [0], [0], [1], [0, 0, 1, 1], [], []>} : vector<8x32xbf16>, vector<32x128xbf16>, vector<8x128xf32> -> vector<8x128xf32>
    %c0_9 = arith.constant 0 : index
    %c0_10 = arith.constant 0 : index
    %11 = vector.load %arg5[%c0_9, %c0_10] : memref<1x128xf32, #tpu.memory_space<vmem>>, vector<1x128xf32>
    %12 = vector.broadcast %11 : vector<1x128xf32> to vector<8x128xf32>
    %13 = arith.addf %10, %12 : vector<8x128xf32>
    %cst_11 = arith.constant dense<0xFF800000> : vector<8xf32>
    %14 = vector.multi_reduction <maximumf>, %13, %cst_11 [1] : vector<8x128xf32> to vector<8xf32>
    %15 = vector.shape_cast %14 : vector<8xf32> to vector<8x1xf32>
    %16 = vector.broadcast %15 : vector<8x1xf32> to vector<8x128xf32>
    %17 = arith.subf %13, %16 : vector<8x128xf32>
    %18 = math.exp %17 : vector<8x128xf32>
    %cst_12 = arith.constant dense<0.000000e+00> : vector<8xf32>
    %19 = vector.multi_reduction <add>, %18, %cst_12 [1] : vector<8x128xf32> to vector<8xf32>
    %20 = vector.shape_cast %19 : vector<8xf32> to vector<8x1xf32>
    %21 = math.log %20 : vector<8x1xf32>
    %22 = vector.broadcast %21 : vector<8x1xf32> to vector<8x128xf32>
    %23 = arith.subf %17, %22 : vector<8x128xf32>
    %24 = arith.truncf %23 : vector<8x128xf32> to vector<8x128xbf16>
    %c0_13 = arith.constant 0 : index
    %c0_14 = arith.constant 0 : index
    %25 = vector.load %arg6[%c0_13, %c0_14] : memref<8x128xbf16, #tpu.memory_space<vmem>>, vector<8x128xbf16>
    tpu.vector_store %arg6[%c0_13, %c0_14], %24 {strides = array<i32>} : memref<8x128xbf16, #tpu.memory_space<vmem>>, vector<8x128xbf16>,
    return
  }
  func.func @transform_0(%arg0: i32) -> (i32, i32) {
    %c0_i32 = arith.constant 0 : i32
    %c0_i32_0 = arith.constant 0 : i32
    return %arg0, %c0_i32 : i32, i32
  }
  func.func @transform_1(%arg0: i32) -> (i32, i32) {
    %c0_i32 = arith.constant 0 : i32
    %c0_i32_0 = arith.constant 0 : i32
    %c0_i32_1 = arith.constant 0 : i32
    return %c0_i32, %c0_i32_0 : i32, i32
  }
  func.func @transform_2(%arg0: i32) -> (i32, i32) {
    %c0_i32 = arith.constant 0 : i32
    %c0_i32_0 = arith.constant 0 : i32
    %c0_i32_1 = arith.constant 0 : i32
    return %c0_i32, %c0_i32_0 : i32, i32
  }
  func.func @transform_3(%arg0: i32) -> (i32, i32) {
    %c0_i32 = arith.constant 0 : i32
    %c0_i32_0 = arith.constant 0 : i32
    %c0_i32_1 = arith.constant 0 : i32
    return %c0_i32, %c0_i32_0 : i32, i32
  }
  func.func @transform_4(%arg0: i32) -> (i32, i32) {
    %c0_i32 = arith.constant 0 : i32
    %c0_i32_0 = arith.constant 0 : i32
    %c0_i32_1 = arith.constant 0 : i32
    return %c0_i32, %c0_i32_0 : i32, i32
  }
  func.func @transform_5(%arg0: i32) -> (i32, i32) {
    %c0_i32 = arith.constant 0 : i32
    %c0_i32_0 = arith.constant 0 : i32
    return %arg0, %c0_i32 : i32, i32
  }
}

</mosaic_0001>

<llo_original>
// kernel: tpu_custom_call.1
$region0: #{tpu_custom_call.1}
  #allocation0 [shape = 'u32[]', space=smem, size = 0x4, offset = 0x4, fixed_abs, tag = 'smem constant byte address 0x4 - core index']
  #allocation1 [shape = 'u32[144,128]{1,0:T(1,128)}', space=vmem, size = 0x12000, scoped, tag = 'internal scratch']
  %s0 = inlined_call_operand.hbm [shape: bf16[8,32], index: 0, kind: input, shape index: {}]
  %s1 = inlined_call_operand.hbm [shape: bf16[32,32], index: 1, kind: input, shape index: {}]
  %s2 = inlined_call_operand.vmem [shape: f32[1,32], index: 2, kind: input, shape index: {}]
  %s3 = inlined_call_operand.hbm [shape: bf16[32,128], index: 3, kind: input, shape index: {}]
  %s4 = inlined_call_operand.vmem [shape: f32[1,128], index: 4, kind: input, shape index: {}]
  %s5 = inlined_call_operand.hbm [shape: bf16[8,128], index: 5, kind: output, shape index: {}]
  %s6 = sld [smem:[#allocation0]]
  $region42: #{tpu_custom_call.1} parent=0
    _
  %s8 = ssub.s32 1, %s6
  %s9 = scalar_select 0, %s8, %s6
  $region1: #{tpu_custom_call.1} parent=0
    #allocation2 [shape = 'u8[2048]{0}', space=vmem, size = 0x800, scoped, tag = 'input window, operand 0, single buffered']
    #allocation3 [shape = 's32[1]{0}', space=sflag, size = 0x4, scoped, tag = 'scoped memory for tpu_custom_call.1']
    #allocation4 [shape = 's32[1]{0}', space=sflag, size = 0x4, scoped, tag = 'scoped memory for tpu_custom_call.1']
    #allocation5 [shape = 'u8[8192]{0}', space=vmem, size = 0x2000, scoped, tag = 'input window, operand 1, single buffered']
    #allocation6 [shape = 's32[1]{0}', space=sflag, size = 0x4, scoped, tag = 'scoped memory for tpu_custom_call.1']
    #allocation7 [shape = 'u8[8192]{0}', space=vmem, size = 0x2000, scoped, tag = 'input window, operand 3, single buffered']
    #allocation8 [shape = 'u8[2048]{0}', space=vmem, size = 0x800, scoped, tag = 'output window, operand 0, single buffered']
    %10 = vsyncpa [#allocation3], 0
    %11 = vsyncpa [#allocation6], 0
    %12 = vsyncpa [#allocation4], 0
    // Predicated region
    $region2: #{tpu_custom_call.1} parent=1 // pred_check
      _
    $region3: #{tpu_custom_call.1} parent=1 // pred_check_branch
      %14 = sbr.rel (0) target = $region5
    $region4: #{tpu_custom_call.1} parent=1 // pred_region
      %s16 = ssub.s32 64, 64
      %17 = vsyncadd [#allocation3], %s16
      %s19 = sshll.u32 [#allocation2], 4
      %s20 = int_to_ptr.vmem [resolvable:$true] %s19
      %22 = dma.hbm_to_vmem [thread:$0]  %s0, 64, %s20, [#allocation3]
    $region5: #{tpu_custom_call.1} parent=1 // pred_fallthru
      _
    // Predicated region
    $region6: #{tpu_custom_call.1} parent=1 // pred_check
      _
    $region7: #{tpu_custom_call.1} parent=1 // pred_check_branch
      %24 = sbr.rel (0) target = $region9
    $region8: #{tpu_custom_call.1} parent=1 // pred_region
      %s26 = ssub.s32 256, 256
      %27 = vsyncadd [#allocation6], %s26
      %s28 = sshll.u32 [#allocation5], 4
      %s29 = int_to_ptr.vmem [resolvable:$true] %s28
      %34 = dma.hbm_to_vmem [thread:$0]  %s1, 256, %s29, [#allocation6], 64, 64, 4
    $region9: #{tpu_custom_call.1} parent=1 // pred_fallthru
      _
    // Predicated region
    $region10: #{tpu_custom_call.1} parent=1 // pred_check
      _
    $region11: #{tpu_custom_call.1} parent=1 // pred_check_branch
      %36 = sbr.rel (0) target = $region13
    $region12: #{tpu_custom_call.1} parent=1 // pred_region
      _
    $region13: #{tpu_custom_call.1} parent=1 // pred_fallthru
      _
    // Predicated region
    $region14: #{tpu_custom_call.1} parent=1 // pred_check
      _
    $region15: #{tpu_custom_call.1} parent=1 // pred_check_branch
      %38 = sbr.rel (0) target = $region17
    $region16: #{tpu_custom_call.1} parent=1 // pred_region
      %s40 = ssub.s32 256, 256
      %41 = vsyncadd [#allocation6], %s40
      %s42 = sshll.u32 [#allocation7], 4
      %s43 = int_to_ptr.vmem [resolvable:$true] %s42
      %48 = dma.hbm_to_vmem [thread:$0]  %s3, 256, %s43, [#allocation6], 64, 64, 4
    $region17: #{tpu_custom_call.1} parent=1 // pred_fallthru
      _
    // Predicated region
    $region18: #{tpu_custom_call.1} parent=1 // pred_check
      _
    $region19: #{tpu_custom_call.1} parent=1 // pred_check_branch
      %50 = sbr.rel (0) target = $region21
    $region20: #{tpu_custom_call.1} parent=1 // pred_region
      _
    $region21: #{tpu_custom_call.1} parent=1 // pred_fallthru
      _
    // Predicated region
    $region22: #{tpu_custom_call.1} parent=1 // pred_check
      _
    $region23: #{tpu_custom_call.1} parent=1 // pred_check_branch
      %52 = sbr.rel (0) target = $region25
    $region24: #{tpu_custom_call.1} parent=1 // pred_region
      %53 = dma.done [#allocation3], 64
    $region25: #{tpu_custom_call.1} parent=1 // pred_fallthru
      _
    // Predicated region
    $region26: #{tpu_custom_call.1} parent=1 // pred_check
      _
    $region27: #{tpu_custom_call.1} parent=1 // pred_check_branch
      %55 = sbr.rel (0) target = $region29
    $region28: #{tpu_custom_call.1} parent=1 // pred_region
      %56 = dma.done [#allocation6], 256
    $region29: #{tpu_custom_call.1} parent=1 // pred_fallthru
      _
    // Predicated region
    $region30: #{tpu_custom_call.1} parent=1 // pred_check
      _
    $region31: #{tpu_custom_call.1} parent=1 // pred_check_branch
      %58 = sbr.rel (0) target = $region33
    $region32: #{tpu_custom_call.1} parent=1 // pred_region
      %59 = dma.done [#allocation6], 256
    $region33: #{tpu_custom_call.1} parent=1 // pred_fallthru
      _
    %v61 = vld [vmem:[#allocation2] sm:$0xf]
    %v62 = vld [vmem:[#allocation5] sm:$0xf]
    %v63 = vld [vmem:[#allocation5 + $0x4] sm:$0xf]
    %v64 = vld [vmem:[#allocation5 + $0x8] sm:$0xf]
    %v65 = vld [vmem:[#allocation5 + $0xc] sm:$0xf]
    %v66 = vld [vmem:[%s2] sm:$0x1]
    %v68 = vlaneseq
    %v69 = vshrl.u32 %v68, 7
    %v70 = vsub.s32 0, %v69
    %v71 = vrot.slane %v66, %v70
    %v77 = vunpack.c.l.b16 %v62
    %v78 = vunpack.c.l.b16 %v63
    %v79 = vunpack.c.l.b16 %v64
    %v80 = vunpack.c.l.b16 %v65
    %v81 = vpack.c.b16 %v78, %v77
    %v82 = vpack.c.b16 %v80, %v79
    %vm85 = vcmask 261120
    %v87 = vsel %vm85, %v61, 0
    %89 = vmatprep.subr.bf16.mxu0 0
    %90 = vmatpush1.bf16.msra.mxu0 %v81
    %91 = vmatprep.subr.bf16.mxu0 0
    %92 = vmatpush1.bf16.msra.mxu0 %v82
    %93 = vmatprep.subr.bf16.mxu0 0
    %94 = vmatpush1.bf16.msra.mxu0 0
    %95 = vmatprep.subr.bf16.mxu0 0
    %96 = vmatpush1.bf16.msra.mxu0 0
    %97 = vmatprep.subr.bf16.mxu0 0
    %98 = vmatpush1.bf16.msra.mxu0 0
    %99 = vmatprep.subr.bf16.mxu0 0
    %100 = vmatpush1.bf16.msra.mxu0 0
    %101 = vmatprep.subr.bf16.mxu0 0
    %102 = vmatpush1.bf16.msra.mxu0 0
    %103 = vmatprep.subr.bf16.mxu0 0
    %104 = vmatpush1.bf16.msra.mxu0 0
    %105 = vmatprep.subr.bf16.mxu0 0
    %106 = vmatpush1.bf16.msra.mxu0 0
    %107 = vmatprep.subr.bf16.mxu0 0
    %108 = vmatpush1.bf16.msra.mxu0 0
    %109 = vmatprep.subr.bf16.mxu0 0
    %110 = vmatpush1.bf16.msra.mxu0 0
    %111 = vmatprep.subr.bf16.mxu0 0
    %112 = vmatpush1.bf16.msra.mxu0 0
    %113 = vmatprep.subr.bf16.mxu0 0
    %114 = vmatpush1.bf16.msra.mxu0 0
    %115 = vmatprep.subr.bf16.mxu0 0
    %116 = vmatpush1.bf16.msra.mxu0 0
    %117 = vmatprep.subr.bf16.mxu0 0
    %118 = vmatpush1.bf16.msra.mxu0 0
    %119 = vmatprep.subr.bf16.mxu0 0
    %120 = vmatpush1.bf16.msra.mxu0 0
    %121 = vmatprep.mubr.bf16.mxu0 0
    %122 = vmatmul.mubr.bf16.gmra.mrb[0].mxu0 %v87
    %v123 = vpop.f32.mrb[0].mxu0
    %v124 = vadd.f32 %v71, %v123
    %v125 = vpop.f32.mrb[0].mxu0
    %v126 = vpop.f32.mrb[0].mxu0
    %v127 = vpop.f32.mrb[0].mxu0
    %128 = vdwg.mxu0
    %v129 = vmax.f32 %v124, 0.0
    %v130 = vpack.c.bf16 %v129, %v129
    %v131 = vld [vmem:[#allocation7] sm:$0xf]
    %v132 = vld [vmem:[#allocation7 + $0x4] sm:$0xf]
    %v133 = vld [vmem:[#allocation7 + $0x8] sm:$0xf]
    %v134 = vld [vmem:[#allocation7 + $0xc] sm:$0xf]
    %v135 = vld [vmem:[%s4] sm:$0x1]
    %v137 = vlaneseq
    %v138 = vshrl.u32 %v137, 7
    %v139 = vsub.s32 0, %v138
    %v140 = vrot.slane %v135, %v139
    %v146 = vunpack.c.l.b16 %v131
    %v147 = vunpack.c.l.b16 %v132
    %v148 = vunpack.c.l.b16 %v133
    %v149 = vunpack.c.l.b16 %v134
    %v150 = vpack.c.b16 %v147, %v146
    %v151 = vpack.c.b16 %v149, %v148
    %v155 = vsel %vm85, %v130, 0
    %157 = vmatprep.subr.bf16.mxu0 0
    %158 = vmatpush1.bf16.msra.mxu0 %v150
    %159 = vmatprep.subr.bf16.mxu0 0
    %160 = vmatpush1.bf16.msra.mxu0 %v151
    %161 = vmatprep.subr.bf16.mxu0 0
    %162 = vmatpush1.bf16.msra.mxu0 0
    %163 = vmatprep.subr.bf16.mxu0 0
    %164 = vmatpush1.bf16.msra.mxu0 0
    %165 = vmatprep.subr.bf16.mxu0 0
    %166 = vmatpush1.bf16.msra.mxu0 0
    %167 = vmatprep.subr.bf16.mxu0 0
    %168 = vmatpush1.bf16.msra.mxu0 0
    %169 = vmatprep.subr.bf16.mxu0 0
    %170 = vmatpush1.bf16.msra.mxu0 0
    %171 = vmatprep.subr.bf16.mxu0 0
    %172 = vmatpush1.bf16.msra.mxu0 0
    %173 = vmatprep.subr.bf16.mxu0 0
    %174 = vmatpush1.bf16.msra.mxu0 0
    %175 = vmatprep.subr.bf16.mxu0 0
    %176 = vmatpush1.bf16.msra.mxu0 0
    %177 = vmatprep.subr.bf16.mxu0 0
    %178 = vmatpush1.bf16.msra.mxu0 0
    %179 = vmatprep.subr.bf16.mxu0 0
    %180 = vmatpush1.bf16.msra.mxu0 0
    %181 = vmatprep.subr.bf16.mxu0 0
    %182 = vmatpush1.bf16.msra.mxu0 0
    %183 = vmatprep.subr.bf16.mxu0 0
    %184 = vmatpush1.bf16.msra.mxu0 0
    %185 = vmatprep.subr.bf16.mxu0 0
    %186 = vmatpush1.bf16.msra.mxu0 0
    %187 = vmatprep.subr.bf16.mxu0 0
    %188 = vmatpush1.bf16.msra.mxu0 0
    %189 = vmatprep.mubr.bf16.mxu0 0
    %190 = vmatmul.mubr.bf16.gmra.mrb[0].mxu0 %v155
    %v191 = vpop.f32.mrb[0].mxu0
    %v192 = vadd.f32 %v140, %v191
    %v193 = vpop.f32.mrb[0].mxu0
    %v194 = vpop.f32.mrb[0].mxu0
    %v195 = vpop.f32.mrb[0].mxu0
    %196 = vdwg.mxu0
    %197 = vmax.xlane.f32.xlu0 %v192
    %v198 = vpop.xlane.xlu0 %197
    %v199 = vsub.f32 %v192, %v198
    %v200 = vmul.f32 %v199, 1.442695
    %v201 = vpow.pop %v200
    %202 = vadd.xlane.f32.xlu0 %v201
    %v203 = vpop.xlane.xlu0 %202
    %v204 = vlog2.pop %v203
    %v205 = vmul.f32 %v204, 0.6931472
    %v206 = vsub.f32 %v199, %v205
    %v207 = vpack.c.bf16 %v206, %v206
    %208 = vst [vmem:[#allocation8] sm:$0xf] %v207
    // Predicated region
    $region34: #{tpu_custom_call.1} parent=1 // pred_check
      _
    $region35: #{tpu_custom_call.1} parent=1 // pred_check_branch
      %210 = sbr.rel (0) target = $region37
    $region36: #{tpu_custom_call.1} parent=1 // pred_region
      %s212 = ssub.s32 64, 64
      %213 = vsyncadd [#allocation4], %s212
      %s215 = sshll.u32 [#allocation8], 4
      %s216 = int_to_ptr.vmem [resolvable:$true] %s215
      %218 = dma.vmem_to_hbm [thread:$0]  %s216, 64, %s5, [#allocation4]
    $region37: #{tpu_custom_call.1} parent=1 // pred_fallthru
      _
    // Predicated region
    $region38: #{tpu_custom_call.1} parent=1 // pred_check
      _
    $region39: #{tpu_custom_call.1} parent=1 // pred_check_branch
      %220 = sbr.rel (0) target = $region41
    $region40: #{tpu_custom_call.1} parent=1 // pred_region
      %221 = dma.done [#allocation4], 64
    $region41: #{tpu_custom_call.1} parent=1 // pred_fallthru
      _
    %222 = vsyncpa [#allocation3], 1
    %223 = vsyncpa [#allocation6], 1
    %224 = vsyncpa [#allocation4], 1

</llo_original>
